<compile_context>
chip_gen: v7x
topology: tpu7x:2x2x1
jax: 0.10.0
libtpu: 0.0.40
codegen_flags: <defaults>
</compile_context>

<pallas_src>
import jax
import jax.numpy as jnp
from jax import lax
from jax.experimental import pallas as pl
from jax.experimental.pallas import tpu as pltpu

K = 3            # ConvTranspose2d(in=1, out=1, kernel=3, stride=1, padding=0)
H = W = 224      # fixed by Model.forward(): x1 = torch.ones([1, 1, 224, 224])
HO = H + K - 1   # 226
WO = W + K - 1   # 226


def convt_ones_kernel(w_ref, b_ref, o_ref):
    """Fully fused ConvTranspose2d(ones(H, W)).

    out[i, j] = b + sum_{kh<=i<kh+H, kw<=j<kw+W} W[kh, kw]

    The column dependence is captured by K profiles crow_kh[j] (shape (1, WO));
    the row dependence only selects which crow_kh are summed:
      * interior rows (K-1 <= i <= H-1): all K profiles          -> one broadcast fill
      * top border rows    i = 0..K-2 : profiles kh = 0..i       -> K-1 row stores
      * bottom border rows i = H..HO-1: profiles kh = i-H+1..K-1 -> K-1 row stores
    """
    ho, wo = o_ref.shape                               # (226, 226) exact output
    b = b_ref[0]

    col = lax.broadcasted_iota(jnp.int32, (1, wo), 1)  # output col index
    # Column in-range predicate for tap kw: kw <= j < kw + W (shared by all kh).
    cmask = [jnp.logical_and(col >= kw, col < kw + W) for kw in range(K)]

    # Per-tap weighted column profiles, built with selects (no casts / muls).
    def crow(kh):
        r = jnp.where(cmask[0], w_ref[kh, 0], 0.0)
        for kw in range(1, K):
            r = r + jnp.where(cmask[kw], w_ref[kh, kw], 0.0)
        return r                                       # (1, WO) f32

    crows = [crow(kh) for kh in range(K)]

    # Interior row value (rows K-1 .. H-1): bias + all taps.  One full-plane
    # broadcast store covers everything; border rows get overwritten below.
    interior = b + crows[0]
    for kh in range(1, K):
        interior = interior + crows[kh]
    o_ref[...] = jnp.broadcast_to(interior, (ho, wo))

    # Top border rows i = 0 .. K-2: valid taps kh = 0 .. i.
    for i in range(K - 1):
        val = b + crows[0]
        for kh in range(1, i + 1):
            val = val + crows[kh]
        o_ref[pl.ds(i, 1), :] = val

    # Bottom border rows i = H .. HO-1: valid taps kh = i-H+1 .. K-1.
    for i in range(H, ho):
        lo = i - H + 1
        val = b + crows[lo]
        for kh in range(lo + 1, K):
            val = val + crows[kh]
        o_ref[pl.ds(i, 1), :] = val


def conv_transpose2d_ones_pallas(weight, bias):
    """weight: (1, 1, K, K) f32 (PyTorch ConvTranspose2d layout (in, out, kH, kW));
    bias: (1,) f32.  Returns ConvTranspose2d(ones(1,1,H,W)) -> (1, 1, H+K-1, W+K-1)."""
    out = pl.pallas_call(
        convt_ones_kernel,
        out_shape=jax.ShapeDtypeStruct((HO, WO), jnp.float32),
        in_specs=[
            pl.BlockSpec(memory_space=pltpu.MemorySpace.SMEM),   # (K, K) weights
            pl.BlockSpec(memory_space=pltpu.MemorySpace.SMEM),   # (1,)  bias
        ],
        # Exact-size full-array output block (exempt from the (8,128) rule).
        out_specs=pl.BlockSpec(memory_space=pltpu.MemorySpace.VMEM),
        cost_estimate=pl.CostEstimate(
            flops=600_000, transcendentals=0, bytes_accessed=HO * WO * 4),
    )(weight[0, 0], bias)
    return out[None, None, :, :]


def model_forward(weight, bias):
    # Mirrors Model.forward(): the ones([1,1,224,224]) input is generated
    # analytically inside the kernel, so nothing is materialized here.
    return conv_transpose2d_ones_pallas(weight, bias)


if __name__ == "__main__":
    # Deterministic parameter init (PyTorch-style uniform(-1/sqrt(fan), 1/sqrt(fan))).
    key = jax.random.PRNGKey(0)
    k_w, k_b = jax.random.split(key)
    fan = 1 * K * K
    bound = 1.0 / (fan ** 0.5)
    weight = jax.random.uniform(k_w, (1, 1, K, K), jnp.float32, -bound, bound)
    bias = jax.random.uniform(k_b, (1,), jnp.float32, -bound, bound)

    out = jax.block_until_ready(model_forward(weight, bias))
    assert out.shape == (1, 1, HO, WO), out.shape

    # Independent reference: ConvTranspose2d(stride=1) == full-padded conv with
    # the spatially flipped kernel.
    x1 = jnp.ones((1, 1, H, W), jnp.float32)
    w_conv = jnp.transpose(weight, (1, 0, 2, 3))[:, :, ::-1, ::-1]  # (out,in,kH,kW) flipped
    ref = lax.conv_general_dilated(
        x1, w_conv, window_strides=(1, 1),
        padding=[(K - 1, K - 1), (K - 1, K - 1)],
        dimension_numbers=("NCHW", "OIHW", "NCHW"),
    ) + bias[None, :, None, None]
    assert jnp.allclose(out, ref, atol=1e-5, rtol=1e-5), float(jnp.max(jnp.abs(out - ref)))

    print("KERNEL_OK")
</pallas_src>

<mosaic_0001>
module attributes {stable_mosaic.version = 11 : i64} {
  func.func @convt_ones_kernel(%arg0: memref<3x3xf32, #tpu.memory_space<smem>>, %arg1: memref<1xf32, #tpu.memory_space<smem>>, %arg2: memref<226x226xf32, #tpu.memory_space<vmem>>) attributes {dimension_semantics = [], scalar_prefetch = 0 : i64, scratch_operands = 0 : i64, tpu.core_type = #tpu.core_type<tc>} {
    %c0 = arith.constant 0 : index
    %0 = memref.load %arg1[%c0] : memref<1xf32, #tpu.memory_space<smem>>
    %1 = tpu.iota {dimensions = array<i32: 1>} : vector<1x226xi32>
    %c0_i32 = arith.constant 0 : i32
    %2 = vector.broadcast %c0_i32 : i32 to vector<1x226xi32>
    %3 = arith.cmpi sge, %1, %2 : vector<1x226xi32>
    %c224_i32 = arith.constant 224 : i32
    %4 = vector.broadcast %c224_i32 : i32 to vector<1x226xi32>
    %5 = arith.cmpi slt, %1, %4 : vector<1x226xi32>
    %6 = arith.andi %3, %5 : vector<1x226xi1>
    %c1_i32 = arith.constant 1 : i32
    %7 = vector.broadcast %c1_i32 : i32 to vector<1x226xi32>
    %8 = arith.cmpi sge, %1, %7 : vector<1x226xi32>
    %c225_i32 = arith.constant 225 : i32
    %9 = vector.broadcast %c225_i32 : i32 to vector<1x226xi32>
    %10 = arith.cmpi slt, %1, %9 : vector<1x226xi32>
    %11 = arith.andi %8, %10 : vector<1x226xi1>
    %c2_i32 = arith.constant 2 : i32
    %12 = vector.broadcast %c2_i32 : i32 to vector<1x226xi32>
    %13 = arith.cmpi sge, %1, %12 : vector<1x226xi32>
    %c226_i32 = arith.constant 226 : i32
    %14 = vector.broadcast %c226_i32 : i32 to vector<1x226xi32>
    %15 = arith.cmpi slt, %1, %14 : vector<1x226xi32>
    %16 = arith.andi %13, %15 : vector<1x226xi1>
    %c0_0 = arith.constant 0 : index
    %c0_1 = arith.constant 0 : index
    %17 = memref.load %arg0[%c0_0, %c0_1] : memref<3x3xf32, #tpu.memory_space<smem>>
    %cst = arith.constant 0.000000e+00 : f32
    %18 = vector.broadcast %17 : f32 to vector<1x226xf32>
    %19 = vector.broadcast %cst : f32 to vector<1x226xf32>
    %20 = arith.select %6, %18, %19 : vector<1x226xi1>, vector<1x226xf32>
    %c0_2 = arith.constant 0 : index
    %c1 = arith.constant 1 : index
    %21 = memref.load %arg0[%c0_2, %c1] : memref<3x3xf32, #tpu.memory_space<smem>>
    %cst_3 = arith.constant 0.000000e+00 : f32
    %22 = vector.broadcast %21 : f32 to vector<1x226xf32>
    %23 = vector.broadcast %cst_3 : f32 to vector<1x226xf32>
    %24 = arith.select %11, %22, %23 : vector<1x226xi1>, vector<1x226xf32>
    %25 = arith.addf %20, %24 : vector<1x226xf32>
    %c0_4 = arith.constant 0 : index
    %c2 = arith.constant 2 : index
    %26 = memref.load %arg0[%c0_4, %c2] : memref<3x3xf32, #tpu.memory_space<smem>>
    %cst_5 = arith.constant 0.000000e+00 : f32
    %27 = vector.broadcast %26 : f32 to vector<1x226xf32>
    %28 = vector.broadcast %cst_5 : f32 to vector<1x226xf32>
    %29 = arith.select %16, %27, %28 : vector<1x226xi1>, vector<1x226xf32>
    %30 = arith.addf %25, %29 : vector<1x226xf32>
    %c1_6 = arith.constant 1 : index
    %c0_7 = arith.constant 0 : index
    %31 = memref.load %arg0[%c1_6, %c0_7] : memref<3x3xf32, #tpu.memory_space<smem>>
    %cst_8 = arith.constant 0.000000e+00 : f32
    %32 = vector.broadcast %31 : f32 to vector<1x226xf32>
    %33 = vector.broadcast %cst_8 : f32 to vector<1x226xf32>
    %34 = arith.select %6, %32, %33 : vector<1x226xi1>, vector<1x226xf32>
    %c1_9 = arith.constant 1 : index
    %c1_10 = arith.constant 1 : index
    %35 = memref.load %arg0[%c1_9, %c1_10] : memref<3x3xf32, #tpu.memory_space<smem>>
    %cst_11 = arith.constant 0.000000e+00 : f32
    %36 = vector.broadcast %35 : f32 to vector<1x226xf32>
    %37 = vector.broadcast %cst_11 : f32 to vector<1x226xf32>
    %38 = arith.select %11, %36, %37 : vector<1x226xi1>, vector<1x226xf32>
    %39 = arith.addf %34, %38 : vector<1x226xf32>
    %c1_12 = arith.constant 1 : index
    %c2_13 = arith.constant 2 : index
    %40 = memref.load %arg0[%c1_12, %c2_13] : memref<3x3xf32, #tpu.memory_space<smem>>
    %cst_14 = arith.constant 0.000000e+00 : f32
    %41 = vector.broadcast %40 : f32 to vector<1x226xf32>
    %42 = vector.broadcast %cst_14 : f32 to vector<1x226xf32>
    %43 = arith.select %16, %41, %42 : vector<1x226xi1>, vector<1x226xf32>
    %44 = arith.addf %39, %43 : vector<1x226xf32>
    %c2_15 = arith.constant 2 : index
    %c0_16 = arith.constant 0 : index
    %45 = memref.load %arg0[%c2_15, %c0_16] : memref<3x3xf32, #tpu.memory_space<smem>>
    %cst_17 = arith.constant 0.000000e+00 : f32
    %46 = vector.broadcast %45 : f32 to vector<1x226xf32>
    %47 = vector.broadcast %cst_17 : f32 to vector<1x226xf32>
    %48 = arith.select %6, %46, %47 : vector<1x226xi1>, vector<1x226xf32>
    %c2_18 = arith.constant 2 : index
    %c1_19 = arith.constant 1 : index
    %49 = memref.load %arg0[%c2_18, %c1_19] : memref<3x3xf32, #tpu.memory_space<smem>>
    %cst_20 = arith.constant 0.000000e+00 : f32
    %50 = vector.broadcast %49 : f32 to vector<1x226xf32>
    %51 = vector.broadcast %cst_20 : f32 to vector<1x226xf32>
    %52 = arith.select %11, %50, %51 : vector<1x226xi1>, vector<1x226xf32>
    %53 = arith.addf %48, %52 : vector<1x226xf32>
    %c2_21 = arith.constant 2 : index
    %c2_22 = arith.constant 2 : index
    %54 = memref.load %arg0[%c2_21, %c2_22] : memref<3x3xf32, #tpu.memory_space<smem>>
    %cst_23 = arith.constant 0.000000e+00 : f32
    %55 = vector.broadcast %54 : f32 to vector<1x226xf32>
    %56 = vector.broadcast %cst_23 : f32 to vector<1x226xf32>
    %57 = arith.select %16, %55, %56 : vector<1x226xi1>, vector<1x226xf32>
    %58 = arith.addf %53, %57 : vector<1x226xf32>
    %59 = vector.broadcast %0 : f32 to vector<1x226xf32>
    %60 = arith.addf %59, %30 : vector<1x226xf32>
    %61 = arith.addf %60, %44 : vector<1x226xf32>
    %62 = arith.addf %61, %58 : vector<1x226xf32>
    %63 = vector.shape_cast %62 : vector<1x226xf32> to vector<1x226xf32>
    %64 = vector.broadcast %63 : vector<1x226xf32> to vector<226x226xf32>
    %c0_24 = arith.constant 0 : index
    %c0_25 = arith.constant 0 : index
    %65 = vector.load %arg2[%c0_24, %c0_25] : memref<226x226xf32, #tpu.memory_space<vmem>>, vector<226x226xf32>
    tpu.vector_store %arg2[%c0_24, %c0_25], %64 {strides = array<i32>} : memref<226x226xf32, #tpu.memory_space<vmem>>, vector<226x226xf32>,
    %66 = vector.broadcast %0 : f32 to vector<1x226xf32>
    %67 = arith.addf %66, %30 : vector<1x226xf32>
    %c0_26 = arith.constant 0 : index
    %c0_27 = arith.constant 0 : index
    %68 = vector.load %arg2[%c0_26, %c0_27] : memref<226x226xf32, #tpu.memory_space<vmem>>, vector<1x226xf32>
    tpu.vector_store %arg2[%c0_26, %c0_27], %67 {strides = array<i32>} : memref<226x226xf32, #tpu.memory_space<vmem>>, vector<1x226xf32>,
    %69 = vector.broadcast %0 : f32 to vector<1x226xf32>
    %70 = arith.addf %69, %30 : vector<1x226xf32>
    %71 = arith.addf %70, %44 : vector<1x226xf32>
    %c1_28 = arith.constant 1 : index
    %c0_29 = arith.constant 0 : index
    %72 = vector.load %arg2[%c1_28, %c0_29] : memref<226x226xf32, #tpu.memory_space<vmem>>, vector<1x226xf32>
    tpu.vector_store %arg2[%c1_28, %c0_29], %71 {strides = array<i32>} : memref<226x226xf32, #tpu.memory_space<vmem>>, vector<1x226xf32>,
    %73 = vector.broadcast %0 : f32 to vector<1x226xf32>
    %74 = arith.addf %73, %44 : vector<1x226xf32>
    %75 = arith.addf %74, %58 : vector<1x226xf32>
    %c224 = arith.constant 224 : index
    %c0_30 = arith.constant 0 : index
    %76 = vector.load %arg2[%c224, %c0_30] : memref<226x226xf32, #tpu.memory_space<vmem>>, vector<1x226xf32>
    tpu.vector_store %arg2[%c224, %c0_30], %75 {strides = array<i32>} : memref<226x226xf32, #tpu.memory_space<vmem>>, vector<1x226xf32>,
    %77 = vector.broadcast %0 : f32 to vector<1x226xf32>
    %78 = arith.addf %77, %58 : vector<1x226xf32>
    %c225 = arith.constant 225 : index
    %c0_31 = arith.constant 0 : index
    %79 = vector.load %arg2[%c225, %c0_31] : memref<226x226xf32, #tpu.memory_space<vmem>>, vector<1x226xf32>
    tpu.vector_store %arg2[%c225, %c0_31], %78 {strides = array<i32>} : memref<226x226xf32, #tpu.memory_space<vmem>>, vector<1x226xf32>,
    return
  }
}

</mosaic_0001>

<llo_original>
// kernel: tpu_custom_call.1
$region0: #{tpu_custom_call.1}
  #allocation0 [shape = 'u32[]', space=smem, size = 0x4, offset = 0x4, fixed_abs, tag = 'smem constant byte address 0x4 - core index']
  #allocation1 [shape = 'u32[144,128]{1,0:T(1,128)}', space=vmem, size = 0x12000, scoped, tag = 'internal scratch']
  #allocation2 [shape = 'f32[1]{0:T(128)S(6)}', space=smem, size = 0x200, scoped, tag = 'scoped memory for tpu_custom_call.1']
  %s0 = inlined_call_operand.hbm [shape: f32[3,3], index: 0, kind: input, shape index: {}]
  %s1 = inlined_call_operand.<no memory space> [shape: f32[1], index: 1, kind: input, shape index: {}]
  %s2 = inlined_call_operand.hbm [shape: f32[226,226], index: 2, kind: output, shape index: {}]
  %s3 = sld [smem:[#allocation0]]
  $region22: #{tpu_custom_call.1} parent=0
    _
  %s5 = ssub.s32 1, %s3
  %s6 = scalar_select 0, %s5, %s3
  %7 = sst [smem:[#allocation2]] %s1
  $region1: #{tpu_custom_call.1} parent=0
    #allocation3 [shape = 'u8[2048]{0}', space=smem, size = 0x800, scoped, tag = 'input window, operand 0, single buffered']
    #allocation4 [shape = 's32[1]{0}', space=sflag, size = 0x4, scoped, tag = 'scoped memory for tpu_custom_call.1']
    #allocation5 [shape = 's32[1]{0}', space=sflag, size = 0x4, scoped, tag = 'scoped memory for tpu_custom_call.1']
    #allocation6 [shape = 'u8[237568]{0}', space=vmem, size = 0x3a000, scoped, tag = 'output window, operand 0, single buffered']
    %8 = vsyncpa [#allocation5], 0
    %9 = vsyncpa [#allocation4], 0
    // Predicated region
    $region2: #{tpu_custom_call.1} parent=1 // pred_check
      _
    $region3: #{tpu_custom_call.1} parent=1 // pred_check_branch
      %11 = sbr.rel (0) target = $region5
    $region4: #{tpu_custom_call.1} parent=1 // pred_region
      %s13 = ssub.s32 64, 64
      %14 = vsyncadd [#allocation5], %s13
      %17 = dma.hbm_to_smem %s0, 64, [#allocation3], [#allocation5]
    $region5: #{tpu_custom_call.1} parent=1 // pred_fallthru
      _
    // Predicated region
    $region6: #{tpu_custom_call.1} parent=1 // pred_check
      _
    $region7: #{tpu_custom_call.1} parent=1 // pred_check_branch
      %19 = sbr.rel (0) target = $region9
    $region8: #{tpu_custom_call.1} parent=1 // pred_region
      _
    $region9: #{tpu_custom_call.1} parent=1 // pred_fallthru
      _
    // Predicated region
    $region10: #{tpu_custom_call.1} parent=1 // pred_check
      _
    $region11: #{tpu_custom_call.1} parent=1 // pred_check_branch
      %21 = sbr.rel (0) target = $region13
    $region12: #{tpu_custom_call.1} parent=1 // pred_region
      %22 = dma.done [#allocation5], 64
    $region13: #{tpu_custom_call.1} parent=1 // pred_fallthru
      _
    %23 = sfence
    %s24 = sld [smem:[#allocation2]]
    %v25 = vlaneseq
    %v26 = vand.u32 %v25, 127
    %v27 = vadd.s32 %v26, 128
    %vm28 = vcmp.ge.s32.totalorder %v26, 0
    %vm29 = vcmp.ge.s32.totalorder %v27, 0
    %vm30 = vcmp.lt.s32.totalorder %v26, 224
    %vm31 = vcmp.lt.s32.totalorder %v27, 224
    %vm32 = vmand %vm28, %vm30
    %vm33 = vmand %vm29, %vm31
    %vm34 = vcmp.ge.s32.totalorder %v26, 1
    %vm35 = vcmp.ge.s32.totalorder %v27, 1
    %vm36 = vcmp.lt.s32.totalorder %v26, 225
    %vm37 = vcmp.lt.s32.totalorder %v27, 225
    %vm38 = vmand %vm34, %vm36
    %vm39 = vmand %vm35, %vm37
    %vm40 = vcmp.ge.s32.totalorder %v26, 2
    %vm41 = vcmp.ge.s32.totalorder %v27, 2
    %vm42 = vcmp.lt.s32.totalorder %v26, 226
    %vm43 = vcmp.lt.s32.totalorder %v27, 226
    %vm44 = vmand %vm40, %vm42
    %vm45 = vmand %vm41, %vm43
    %s46 = sld [smem:[#allocation3]]
    %v47 = vstv %s46
    %v48 = vsel %vm32, %v47, 0.0
    %v49 = vsel %vm33, %v47, 0.0
    %s50 = sld [smem:[#allocation3 + $0x1]]
    %v51 = vstv %s50
    %v52 = vsel %vm38, %v51, 0.0
    %v53 = vsel %vm39, %v51, 0.0
    %v54 = vadd.f32 %v48, %v52
    %v55 = vadd.f32 %v49, %v53
    %s56 = sld [smem:[#allocation3 + $0x2]]
    %v57 = vstv %s56
    %v58 = vsel %vm44, %v57, 0.0
    %v59 = vsel %vm45, %v57, 0.0
    %v60 = vadd.f32 %v54, %v58
    %v61 = vadd.f32 %v55, %v59
    %s62 = sld [smem:[#allocation3 + $0x80]]
    %v63 = vstv %s62
    %v64 = vsel %vm32, %v63, 0.0
    %v65 = vsel %vm33, %v63, 0.0
    %s66 = sld [smem:[#allocation3 + $0x81]]
    %v67 = vstv %s66
    %v68 = vsel %vm38, %v67, 0.0
    %v69 = vsel %vm39, %v67, 0.0
    %v70 = vadd.f32 %v64, %v68
    %v71 = vadd.f32 %v65, %v69
    %s72 = sld [smem:[#allocation3 + $0x82]]
    %v73 = vstv %s72
    %v74 = vsel %vm44, %v73, 0.0
    %v75 = vsel %vm45, %v73, 0.0
    %v76 = vadd.f32 %v70, %v74
    %v77 = vadd.f32 %v71, %v75
    %s78 = sld [smem:[#allocation3 + $0x100]]
    %v79 = vstv %s78
    %v80 = vsel %vm32, %v79, 0.0
    %v81 = vsel %vm33, %v79, 0.0
    %s82 = sld [smem:[#allocation3 + $0x101]]
    %v83 = vstv %s82
    %v84 = vsel %vm38, %v83, 0.0
    %v85 = vsel %vm39, %v83, 0.0
    %v86 = vadd.f32 %v80, %v84
    %v87 = vadd.f32 %v81, %v85
    %s88 = sld [smem:[#allocation3 + $0x102]]
    %v89 = vstv %s88
    %v90 = vsel %vm44, %v89, 0.0
    %v91 = vsel %vm45, %v89, 0.0
    %v92 = vadd.f32 %v86, %v90
    %v93 = vadd.f32 %v87, %v91
    %v94 = vstv %s24
    %v95 = vadd.f32 %v94, %v60
    %v96 = vadd.f32 %v94, %v61
    %v97 = vadd.f32 %v95, %v76
    %v98 = vadd.f32 %v96, %v77
    %v99 = vadd.f32 %v97, %v92
    %v100 = vadd.f32 %v98, %v93
    %101 = vst [vmem:[#allocation6] sm:$0xff] %v99
    %vm102 = vcmask 801792
    %103 = vst.msk [vmem:[#allocation6 + $0x8] sm:$0xff] %vm102, %v100
    %104 = vst [vmem:[#allocation6 + $0x10] sm:$0xff] %v99
    %105 = vst.msk [vmem:[#allocation6 + $0x18] sm:$0xff] %vm102, %v100
    %106 = vst [vmem:[#allocation6 + $0x20] sm:$0xff] %v99
    %107 = vst.msk [vmem:[#allocation6 + $0x28] sm:$0xff] %vm102, %v100
    %108 = vst [vmem:[#allocation6 + $0x30] sm:$0xff] %v99
    %109 = vst.msk [vmem:[#allocation6 + $0x38] sm:$0xff] %vm102, %v100
    %110 = vst [vmem:[#allocation6 + $0x40] sm:$0xff] %v99
    %111 = vst.msk [vmem:[#allocation6 + $0x48] sm:$0xff] %vm102, %v100
    %112 = vst [vmem:[#allocation6 + $0x50] sm:$0xff] %v99
    %113 = vst.msk [vmem:[#allocation6 + $0x58] sm:$0xff] %vm102, %v100
    %114 = vst [vmem:[#allocation6 + $0x60] sm:$0xff] %v99
    %115 = vst.msk [vmem:[#allocation6 + $0x68] sm:$0xff] %vm102, %v100
    %116 = vst [vmem:[#allocation6 + $0x70] sm:$0xff] %v99
    %117 = vst.msk [vmem:[#allocation6 + $0x78] sm:$0xff] %vm102, %v100
    %118 = vst [vmem:[#allocation6 + $0x80] sm:$0xff] %v99
    %119 = vst.msk [vmem:[#allocation6 + $0x88] sm:$0xff] %vm102, %v100
    %120 = vst [vmem:[#allocation6 + $0x90] sm:$0xff] %v99
    %121 = vst.msk [vmem:[#allocation6 + $0x98] sm:$0xff] %vm102, %v100
    %122 = vst [vmem:[#allocation6 + $0xa0] sm:$0xff] %v99
    %123 = vst.msk [vmem:[#allocation6 + $0xa8] sm:$0xff] %vm102, %v100
    %124 = vst [vmem:[#allocation6 + $0xb0] sm:$0xff] %v99
    %125 = vst.msk [vmem:[#allocation6 + $0xb8] sm:$0xff] %vm102, %v100
    %126 = vst [vmem:[#allocation6 + $0xc0] sm:$0xff] %v99
    %127 = vst.msk [vmem:[#allocation6 + $0xc8] sm:$0xff] %vm102, %v100
    %128 = vst [vmem:[#allocation6 + $0xd0] sm:$0xff] %v99
    %129 = vst.msk [vmem:[#allocation6 + $0xd8] sm:$0xff] %vm102, %v100
    %130 = vst [vmem:[#allocation6 + $0xe0] sm:$0xff] %v99
    %131 = vst.msk [vmem:[#allocation6 + $0xe8] sm:$0xff] %vm102, %v100
    %132 = vst [vmem:[#allocation6 + $0xf0] sm:$0xff] %v99
    %133 = vst.msk [vmem:[#allocation6 + $0xf8] sm:$0xff] %vm102, %v100
    %134 = vst [vmem:[#allocation6 + $0x100] sm:$0xff] %v99
    %135 = vst.msk [vmem:[#allocation6 + $0x108] sm:$0xff] %vm102, %v100
    %136 = vst [vmem:[#allocation6 + $0x110] sm:$0xff] %v99
    %137 = vst.msk [vmem:[#allocation6 + $0x118] sm:$0xff] %vm102, %v100
    %138 = vst [vmem:[#allocation6 + $0x120] sm:$0xff] %v99
    %139 = vst.msk [vmem:[#allocation6 + $0x128] sm:$0xff] %vm102, %v100
    %140 = vst [vmem:[#allocation6 + $0x130] sm:$0xff] %v99
    %141 = vst.msk [vmem:[#allocation6 + $0x138] sm:$0xff] %vm102, %v100
    %142 = vst [vmem:[#allocation6 + $0x140] sm:$0xff] %v99
    %143 = vst.msk [vmem:[#allocation6 + $0x148] sm:$0xff] %vm102, %v100
    %144 = vst [vmem:[#allocation6 + $0x150] sm:$0xff] %v99
    %145 = vst.msk [vmem:[#allocation6 + $0x158] sm:$0xff] %vm102, %v100
    %146 = vst [vmem:[#allocation6 + $0x160] sm:$0xff] %v99
    %147 = vst.msk [vmem:[#allocation6 + $0x168] sm:$0xff] %vm102, %v100
    %148 = vst [vmem:[#allocation6 + $0x170] sm:$0xff] %v99
    %149 = vst.msk [vmem:[#allocation6 + $0x178] sm:$0xff] %vm102, %v100
    %150 = vst [vmem:[#allocation6 + $0x180] sm:$0xff] %v99
    %151 = vst.msk [vmem:[#allocation6 + $0x188] sm:$0xff] %vm102, %v100
    %152 = vst [vmem:[#allocation6 + $0x190] sm:$0xff] %v99
    %153 = vst.msk [vmem:[#allocation6 + $0x198] sm:$0xff] %vm102, %v100
    %154 = vst [vmem:[#allocation6 + $0x1a0] sm:$0xff] %v99
    %155 = vst.msk [vmem:[#allocation6 + $0x1a8] sm:$0xff] %vm102, %v100
    %156 = vst [vmem:[#allocation6 + $0x1b0] sm:$0xff] %v99
    %157 = vst.msk [vmem:[#allocation6 + $0x1b8] sm:$0xff] %vm102, %v100
    %158 = vst [vmem:[#allocation6 + $0x1c0] sm:$0x3] %v99
    %vm159 = vcmask 795648
    %160 = vst.msk [vmem:[#allocation6 + $0x1c8] sm:$0x3] %vm159, %v100
    %v163 = vcombine.low %v95, %v96
    %v165 = vunpack.c.l.s4 1966171168
    %v166 = vunpack.c.0.s8 %v165
    %v167 = vlaneseq
    %v168 = vshrl.u32 %v167, 7
    %v169 = vsub.s32 %v166, %v168
    %v170 = vrot.slane %v163, %v169
    %v172 = vunpack.c.l.s4 1966171168
    %v173 = vunpack.c.0.s8 %v172
    %v174 = vlaneseq
    %v175 = vshrl.u32 %v174, 7
    %v176 = vsub.s32 %v173, %v175
    %v177 = vrot.slane %v170, %v176
    %v179 = vlaneseq
    %vm180 = vcmp.ge.s32.totalorder %v179, 0
    %vm181 = vcmp.lt.s32.totalorder %v179, 226
    %vm182 = vmand %vm180, %vm181
    %183 = vst.msk [vmem:[#allocation6] ss:$8 sm:$0x3] %vm182, %v177
    %184 = vst.msk [vmem:[#allocation6] ss:$8 sm:$0x0] %vm182, %v177
    %v187 = vcombine.low %v97, %v98
    %v189 = vunpack.c.l.s4 1966171168
    %v190 = vunpack.c.0.s8 %v189
    %v191 = vlaneseq
    %v192 = vshrl.u32 %v191, 7
    %v193 = vsub.s32 %v190, %v192
    %v194 = vrot.slane %v187, %v193
    %v196 = vunpack.c.l.s4 1966171168
    %v197 = vunpack.c.0.s8 %v196
    %v198 = vlaneseq
    %v199 = vshrl.u32 %v198, 7
    %v200 = vsub.s32 %v197, %v199
    %v201 = vrot.slane %v194, %v200
    %s203 = scalar_lea.vmem [#allocation6], 1
    %204 = vst.msk [vmem:[%s203] ss:$8 sm:$0x3] %vm182, %v201
    %205 = vst.msk [vmem:[%s203] ss:$8 sm:$0x0] %vm182, %v201
    %v206 = vadd.f32 %v94, %v76
    %v207 = vadd.f32 %v94, %v77
    %v208 = vadd.f32 %v206, %v92
    %v209 = vadd.f32 %v207, %v93
    %v212 = vcombine.low %v208, %v209
    %v214 = vunpack.c.l.s4 1966171168
    %v215 = vunpack.c.0.s8 %v214
    %v216 = vlaneseq
    %v217 = vshrl.u32 %v216, 7
    %v218 = vsub.s32 %v215, %v217
    %v219 = vrot.slane %v212, %v218
    %v221 = vunpack.c.l.s4 1966171168
    %v222 = vunpack.c.0.s8 %v221
    %v223 = vlaneseq
    %v224 = vshrl.u32 %v223, 7
    %v225 = vsub.s32 %v222, %v224
    %v226 = vrot.slane %v219, %v225
    %s228 = scalar_lea.vmem [#allocation6], 448
    %229 = vst.msk [vmem:[%s228] ss:$8 sm:$0x3] %vm182, %v226
    %230 = vst.msk [vmem:[%s228] ss:$8 sm:$0x0] %vm182, %v226
    %v231 = vadd.f32 %v94, %v92
    %v232 = vadd.f32 %v94, %v93
    %v235 = vcombine.low %v231, %v232
    %v237 = vunpack.c.l.s4 1966171168
    %v238 = vunpack.c.0.s8 %v237
    %v239 = vlaneseq
    %v240 = vshrl.u32 %v239, 7
    %v241 = vsub.s32 %v238, %v240
    %v242 = vrot.slane %v235, %v241
    %v244 = vunpack.c.l.s4 1966171168
    %v245 = vunpack.c.0.s8 %v244
    %v246 = vlaneseq
    %v247 = vshrl.u32 %v246, 7
    %v248 = vsub.s32 %v245, %v247
    %v249 = vrot.slane %v242, %v248
    %s251 = scalar_lea.vmem [#allocation6], 449
    %252 = vst.msk [vmem:[%s251] ss:$8 sm:$0x3] %vm182, %v249
    %253 = vst.msk [vmem:[%s251] ss:$8 sm:$0x0] %vm182, %v249
    // Predicated region
    $region14: #{tpu_custom_call.1} parent=1 // pred_check
      _
    $region15: #{tpu_custom_call.1} parent=1 // pred_check_branch
      %255 = sbr.rel (0) target = $region17
    $region16: #{tpu_custom_call.1} parent=1 // pred_region
      %s257 = ssub.s32 7424, 7424
      %258 = vsyncadd [#allocation4], %s257
      %s259 = sshll.u32 [#allocation6], 4
      %s260 = int_to_ptr.vmem [resolvable:$true] %s259
      %265 = dma.vmem_to_hbm [thread:$0]  %s260, 7424, %s2, [#allocation4], 256, 256, 16
    $region17: #{tpu_custom_call.1} parent=1 // pred_fallthru
      _
    // Predicated region
    $region18: #{tpu_custom_call.1} parent=1 // pred_check
      _
    $region19: #{tpu_custom_call.1} parent=1 // pred_check_branch
      %267 = sbr.rel (0) target = $region21
    $region20: #{tpu_custom_call.1} parent=1 // pred_region
      %268 = dma.done [#allocation4], 7424
    $region21: #{tpu_custom_call.1} parent=1 // pred_fallthru
      _
    %269 = vsyncpa [#allocation4], 1
    %270 = vsyncpa [#allocation5], 1

</llo_original>
